<compile_context>
chip_gen: v7x
topology: tpu7x:2x2x1
jax: 0.10.0
libtpu: 0.0.40
codegen_flags: <defaults>
</compile_context>

<pallas_src>
import functools

import jax
import jax.numpy as jnp
from jax.experimental import pallas as pl
from jax.experimental.pallas import tpu as pltpu


def _round_up(x, m):
    return (x + m - 1) // m * m


def _cdiv(a, b):
    return -(-a // b)


# ---------------------------------------------------------------------------
# Kernel
# ---------------------------------------------------------------------------
def mlp_kernel(x_ref, w0_ref, w1_ref, wl_ref, b_ref, out_ref, *, h0p, h1p, d_out):
    # Layer 0: Linear (input normalization pre-folded into w0/b0) + ReLU.
    h = jnp.dot(x_ref[...], w0_ref[...], preferred_element_type=jnp.float32)
    h = jnp.maximum(h + b_ref[0:1, :h0p], 0.0)
    # Layer 1: Linear + ReLU.  Bias/ReLU stay on the f32 accumulator.
    h = jnp.dot(h.astype(w1_ref.dtype), w1_ref[...],
                preferred_element_type=jnp.float32)
    h = jnp.maximum(h + b_ref[1:2, :h1p], 0.0)
    # last_fc; output_activation == identity.
    out_ref[...] = (jnp.dot(h.astype(wl_ref.dtype), wl_ref[...],
                            preferred_element_type=jnp.float32)
                    + b_ref[2:3, :d_out]).astype(out_ref.dtype)


# ---------------------------------------------------------------------------
# One-time parameter preparation (hoisted out of the per-call path)
# ---------------------------------------------------------------------------
def prepare_mlp_params(mu, std, w0, b0, w1, b1, wl, bl, *,
                       compute_dtype=jnp.float32):
    """Fold input stats into layer 0, pad feature dims, pack biases.

    Weights are stored pre-transposed as [d_in, d_out] (y = x @ W + b).
    Call once; reuse the result with mlp_forward_prepared().
    """
    d_in, h0 = w0.shape
    h1 = w1.shape[1]
    d_out = wl.shape[1]

    # Exact fold of (x - mu) / (std + 1e-6) into layer 0 (FP rounding order
    # differs slightly from the unfused reference; covered by 1e-4 tolerance).
    inv_std = 1.0 / (std.astype(jnp.float32) + 1e-6)          # (1, d_in)
    w0f = w0 * inv_std.reshape(-1, 1)                          # scale rows
    b0f = b0 - (mu * inv_std) @ w0                             # shift -> bias

    # Pad hidden dims to 128 lanes.  Padded weight rows/cols and padded bias
    # lanes are zero, so padded hidden columns stay exactly 0 through ReLU.
    h0p = _round_up(h0, 128)
    h1p = _round_up(h1, 128)
    wmax = max(h0p, h1p, d_out)

    w0p = jnp.zeros((d_in, h0p), compute_dtype).at[:, :h0].set(
        w0f.astype(compute_dtype))
    w1p = jnp.zeros((h0p, h1p), compute_dtype).at[:h0, :h1].set(
        w1.astype(compute_dtype))
    wlp = jnp.zeros((h1p, d_out), compute_dtype).at[:h1, :].set(
        wl.astype(compute_dtype))

    # Pack the three tiny bias rows into one f32 operand (a single DMA).
    bpk = jnp.zeros((3, wmax), jnp.float32)
    bpk = bpk.at[0, :h0].set(b0f.reshape(-1).astype(jnp.float32))
    bpk = bpk.at[1, :h1].set(b1.reshape(-1).astype(jnp.float32))
    bpk = bpk.at[2, :d_out].set(bl.reshape(-1).astype(jnp.float32))

    return dict(w0=w0p, w1=w1p, wl=wlp, b=bpk,
                d_in=d_in, d_out=d_out, h0p=h0p, h1p=h1p,
                compute_dtype=compute_dtype)


def _pick_batch_tiling(B, batch_tile):
    """Sublane-aligned batch tile that scales with B; prefers >=2 grid steps."""
    batch_tile = max(8, _round_up(int(batch_tile), 8))
    b8 = _round_up(B, 8)
    n_steps = max(1, _cdiv(b8, batch_tile))
    if n_steps == 1 and b8 >= 16:
        n_steps = 2          # give v7x's second TensorCore some work
    tb = _round_up(_cdiv(b8, n_steps), 8)
    return tb, tb * n_steps


# ---------------------------------------------------------------------------
# Per-call forward
# ---------------------------------------------------------------------------
def mlp_forward_prepared(x, params, *, batch_tile=512):
    B, d_in = x.shape
    assert d_in == params["d_in"]
    w0p, w1p, wlp, bpk = params["w0"], params["w1"], params["wl"], params["b"]
    h0p, h1p, d_out = params["h0p"], params["h1p"], params["d_out"]
    cdt = params["compute_dtype"]

    tb, bp = _pick_batch_tiling(B, batch_tile)
    xk = x.astype(cdt)
    if bp != B:                       # pad batch rows only when needed
        xk = jnp.zeros((bp, d_in), cdt).at[:B].set(xk)

    kern = functools.partial(mlp_kernel, h0p=h0p, h1p=h1p, d_out=d_out)

    itemsize = jnp.dtype(cdt).itemsize
    weight_bytes = (w0p.size + w1p.size + wlp.size) * itemsize + bpk.size * 4
    stream_bytes = 2 * tb * (d_in * itemsize + d_out * 4)   # dbl-buffered x/out
    scratch_bytes = 4 * tb * (h0p + h1p) * 4                 # f32 intermediates
    vmem_needed = 2 * weight_bytes + stream_bytes + scratch_bytes
    vmem_limit = int(min(max(2 * vmem_needed, 32 << 20), 64 << 20))

    cost = pl.CostEstimate(
        flops=int(2 * bp * (d_in * h0p + h0p * h1p + h1p * d_out)),
        transcendentals=0,
        bytes_accessed=int(bp * (d_in * itemsize + d_out * 4) + weight_bytes))

    x_spec = pl.BlockSpec((tb, d_in), lambda i: (i, 0))
    out_spec = pl.BlockSpec((tb, d_out), lambda i: (i, 0))

    def call(single_buffer_weights):
        if single_buffer_weights and hasattr(pl, "Buffered"):
            def resident(arr):  # constant index_map -> one buffer is enough
                return pl.BlockSpec(arr.shape, lambda i: (0,) * arr.ndim,
                                    pipeline_mode=pl.Buffered(1))
        else:
            def resident(arr):
                return pl.BlockSpec(arr.shape, lambda i: (0,) * arr.ndim)
        return pl.pallas_call(
            kern,
            out_shape=jax.ShapeDtypeStruct((bp, d_out), jnp.float32),
            grid=(bp // tb,),
            in_specs=[x_spec, resident(w0p), resident(w1p),
                      resident(wlp), resident(bpk)],
            out_specs=out_spec,
            compiler_params=pltpu.CompilerParams(
                dimension_semantics=("parallel",),
                vmem_limit_bytes=vmem_limit),
            cost_estimate=cost,
        )(xk, w0p, w1p, wlp, bpk)

    try:
        out = call(True)
    except Exception:
        # pipeline_mode=pl.Buffered(1) not supported by this jax/Mosaic build;
        # fall back to default (double-buffered) weight specs.
        out = call(False)

    return out if bp == B else out[:B]


def mlp_forward(x, mu, std, w0, b0, w1, b1, wl, bl, *, batch_tile=512,
                compute_dtype=jnp.float32):
    """Convenience wrapper.  For serving, call prepare_mlp_params() once and
    reuse it with mlp_forward_prepared() — the prep is per-call overhead."""
    params = prepare_mlp_params(mu, std, w0, b0, w1, b1, wl, bl,
                                compute_dtype=compute_dtype)
    return mlp_forward_prepared(x, params, batch_tile=batch_tile)


# ---------------------------------------------------------------------------
# Initialization matching the PyTorch module, and a pure-JAX reference
# ---------------------------------------------------------------------------
def fanin_init(key, shape, w_scale=1.0):
    # shape is (fan_in, fan_out) since weights are stored pre-transposed;
    # matches PyTorch fanin_init (fan_in = weight.size(1) of the [out,in] tensor).
    fan_in = shape[0]
    bound = 1.0 / jnp.sqrt(fan_in)
    return jax.random.uniform(key, shape, jnp.float32, -bound, bound) * w_scale


def build_params(key, input_size, hidden_sizes, output_size,
                 init_w=0.003, b_init_value=0.1):
    k0, k1, k2, k3 = jax.random.split(key, 4)
    h0, h1 = hidden_sizes
    w0 = fanin_init(k0, (input_size, h0))
    b0 = jnp.full((1, h0), b_init_value, jnp.float32)
    w1 = fanin_init(k1, (h0, h1))
    b1 = jnp.full((1, h1), b_init_value, jnp.float32)
    wl = jax.random.uniform(k2, (h1, output_size), jnp.float32, -init_w, init_w)
    bl = jax.random.uniform(k3, (1, output_size), jnp.float32, -init_w, init_w)
    mu = jnp.zeros((1, input_size), jnp.float32)     # input_mu (non-trainable)
    std = jnp.ones((1, input_size), jnp.float32)     # input_std (non-trainable)
    return mu, std, w0, b0, w1, b1, wl, bl


def mlp_reference(x, mu, std, w0, b0, w1, b1, wl, bl):
    h = (x - mu) / (std + 1e-6)
    h = jnp.maximum(h @ w0 + b0, 0.0)
    h = jnp.maximum(h @ w1 + b1, 0.0)
    return h @ wl + bl


if __name__ == "__main__":
    key = jax.random.PRNGKey(0)
    kx, kp, km, ks, kx2 = jax.random.split(key, 5)

    batch = 8
    input_size = 16
    hidden_sizes = (32, 32)
    output_size = 8

    x = jax.random.normal(kx, (batch, input_size), jnp.float32)
    mu, std, w0, b0, w1, b1, wl, bl = build_params(
        kp, input_size, hidden_sizes, output_size)
    # Non-trivial input stats (as if fit_input_stats had run) to exercise the
    # normalization fold.
    mu = 0.1 * jax.random.normal(km, (1, input_size), jnp.float32)
    std = 1.0 + 0.5 * jax.random.uniform(ks, (1, input_size), jnp.float32)

    # One-time param prep (fold + pad + pack), then the per-call kernel.
    params = prepare_mlp_params(mu, std, w0, b0, w1, b1, wl, bl)

    out = mlp_forward_prepared(x, params)
    out = jax.block_until_ready(out)
    ref = mlp_reference(x, mu, std, w0, b0, w1, b1, wl, bl)
    assert out.shape == (batch, output_size)
    # Folding changes FP rounding order vs. the reference; keep 1e-4 tolerance.
    assert jnp.allclose(out, ref, atol=1e-4, rtol=1e-4), (
        float(jnp.max(jnp.abs(out - ref))))

    # Second call reusing prepared params: exercises batch padding + >=2 grid
    # steps ("parallel" axis sharded across TensorCores on v7x).
    x2 = jax.random.normal(kx2, (20, input_size), jnp.float32)
    out2 = jax.block_until_ready(mlp_forward_prepared(x2, params))
    ref2 = mlp_reference(x2, mu, std, w0, b0, w1, b1, wl, bl)
    assert out2.shape == (20, output_size)
    assert jnp.allclose(out2, ref2, atol=1e-4, rtol=1e-4), (
        float(jnp.max(jnp.abs(out2 - ref2))))

    print("KERNEL_OK")
</pallas_src>

<mosaic_0001>
module attributes {stable_mosaic.version = 11 : i64} {
  func.func @mlp_kernel(%arg0: i32, %arg1: memref<8x16xf32, #tpu.memory_space<vmem>>, %arg2: memref<16x128xf32, #tpu.memory_space<vmem>>, %arg3: memref<128x128xf32, #tpu.memory_space<vmem>>, %arg4: memref<128x8xf32, #tpu.memory_space<vmem>>, %arg5: memref<3x128xf32, #tpu.memory_space<vmem>>, %arg6: memref<8x8xf32, #tpu.memory_space<vmem>>) attributes {dimension_semantics = [#tpu.dimension_semantics<parallel>], iteration_bounds = array<i64: 1>, scalar_prefetch = 0 : i64, scratch_operands = 0 : i64, tpu.core_type = #tpu.core_type<tc>, window_params = [{transform_indices = @transform_0, window_bounds = array<i64: 8, 16>}, {pipeline_mode = #tpu.pipeline_mode<synchronous>, transform_indices = @transform_1, window_bounds = array<i64: 16, 128>}, {pipeline_mode = #tpu.pipeline_mode<synchronous>, transform_indices = @transform_2, window_bounds = array<i64: 128, 128>}, {pipeline_mode = #tpu.pipeline_mode<synchronous>, transform_indices = @transform_3, window_bounds = array<i64: 128, 8>}, {pipeline_mode = #tpu.pipeline_mode<synchronous>, transform_indices = @transform_4, window_bounds = array<i64: 3, 128>}, {transform_indices = @transform_5, window_bounds = array<i64: 8, 8>}]} {
    %c0 = arith.constant 0 : index
    %c0_0 = arith.constant 0 : index
    %0 = vector.load %arg1[%c0, %c0_0] : memref<8x16xf32, #tpu.memory_space<vmem>>, vector<8x16xf32>
    %c0_1 = arith.constant 0 : index
    %c0_2 = arith.constant 0 : index
    %1 = vector.load %arg2[%c0_1, %c0_2] : memref<16x128xf32, #tpu.memory_space<vmem>>, vector<16x128xf32>
    %cst = arith.constant dense<0.000000e+00> : vector<8x128xf32>
    %2 = tpu.matmul %0, %1, %cst {dimension_numbers = #tpu.dot_dimension_numbers<[1], [0], [0], [1], [0, 0, 1, 1], [], []>} : vector<8x16xf32>, vector<16x128xf32>, vector<8x128xf32> -> vector<8x128xf32>
    %c0_3 = arith.constant 0 : index
    %c0_4 = arith.constant 0 : index
    %3 = vector.load %arg5[%c0_3, %c0_4] : memref<3x128xf32, #tpu.memory_space<vmem>>, vector<1x128xf32>
    %4 = vector.broadcast %3 : vector<1x128xf32> to vector<8x128xf32>
    %5 = arith.addf %2, %4 : vector<8x128xf32>
    %cst_5 = arith.constant 0.000000e+00 : f32
    %6 = vector.broadcast %cst_5 : f32 to vector<8x128xf32>
    %7 = arith.maximumf %5, %6 : vector<8x128xf32>
    %c0_6 = arith.constant 0 : index
    %c0_7 = arith.constant 0 : index
    %8 = vector.load %arg3[%c0_6, %c0_7] : memref<128x128xf32, #tpu.memory_space<vmem>>, vector<128x128xf32>
    %cst_8 = arith.constant dense<0.000000e+00> : vector<8x128xf32>
    %9 = tpu.matmul %7, %8, %cst_8 {dimension_numbers = #tpu.dot_dimension_numbers<[1], [0], [0], [1], [0, 0, 1, 1], [], []>} : vector<8x128xf32>, vector<128x128xf32>, vector<8x128xf32> -> vector<8x128xf32>
    %c1 = arith.constant 1 : index
    %c0_9 = arith.constant 0 : index
    %10 = vector.load %arg5[%c1, %c0_9] : memref<3x128xf32, #tpu.memory_space<vmem>>, vector<1x128xf32>
    %11 = vector.broadcast %10 : vector<1x128xf32> to vector<8x128xf32>
    %12 = arith.addf %9, %11 : vector<8x128xf32>
    %cst_10 = arith.constant 0.000000e+00 : f32
    %13 = vector.broadcast %cst_10 : f32 to vector<8x128xf32>
    %14 = arith.maximumf %12, %13 : vector<8x128xf32>
    %c0_11 = arith.constant 0 : index
    %c0_12 = arith.constant 0 : index
    %15 = vector.load %arg4[%c0_11, %c0_12] : memref<128x8xf32, #tpu.memory_space<vmem>>, vector<128x8xf32>
    %cst_13 = arith.constant dense<0.000000e+00> : vector<8x8xf32>
    %16 = tpu.matmul %14, %15, %cst_13 {dimension_numbers = #tpu.dot_dimension_numbers<[1], [0], [0], [1], [0, 0, 1, 1], [], []>} : vector<8x128xf32>, vector<128x8xf32>, vector<8x8xf32> -> vector<8x8xf32>
    %c2 = arith.constant 2 : index
    %c0_14 = arith.constant 0 : index
    %17 = vector.load %arg5[%c2, %c0_14] : memref<3x128xf32, #tpu.memory_space<vmem>>, vector<1x8xf32>
    %18 = vector.broadcast %17 : vector<1x8xf32> to vector<8x8xf32>
    %19 = arith.addf %16, %18 : vector<8x8xf32>
    %c0_15 = arith.constant 0 : index
    %c0_16 = arith.constant 0 : index
    %20 = vector.load %arg6[%c0_15, %c0_16] : memref<8x8xf32, #tpu.memory_space<vmem>>, vector<8x8xf32>
    tpu.vector_store %arg6[%c0_15, %c0_16], %19 {strides = array<i32>} : memref<8x8xf32, #tpu.memory_space<vmem>>, vector<8x8xf32>,
    return
  }
  func.func @transform_0(%arg0: i32) -> (i32, i32) {
    %c0_i32 = arith.constant 0 : i32
    %c0_i32_0 = arith.constant 0 : i32
    return %arg0, %c0_i32 : i32, i32
  }
  func.func @transform_1(%arg0: i32) -> (i32, i32) {
    %c0_i32 = arith.constant 0 : i32
    %c0_i32_0 = arith.constant 0 : i32
    %c0_i32_1 = arith.constant 0 : i32
    return %c0_i32, %c0_i32_0 : i32, i32
  }
  func.func @transform_2(%arg0: i32) -> (i32, i32) {
    %c0_i32 = arith.constant 0 : i32
    %c0_i32_0 = arith.constant 0 : i32
    %c0_i32_1 = arith.constant 0 : i32
    return %c0_i32, %c0_i32_0 : i32, i32
  }
  func.func @transform_3(%arg0: i32) -> (i32, i32) {
    %c0_i32 = arith.constant 0 : i32
    %c0_i32_0 = arith.constant 0 : i32
    %c0_i32_1 = arith.constant 0 : i32
    return %c0_i32, %c0_i32_0 : i32, i32
  }
  func.func @transform_4(%arg0: i32) -> (i32, i32) {
    %c0_i32 = arith.constant 0 : i32
    %c0_i32_0 = arith.constant 0 : i32
    %c0_i32_1 = arith.constant 0 : i32
    return %c0_i32, %c0_i32_0 : i32, i32
  }
  func.func @transform_5(%arg0: i32) -> (i32, i32) {
    %c0_i32 = arith.constant 0 : i32
    %c0_i32_0 = arith.constant 0 : i32
    return %arg0, %c0_i32 : i32, i32
  }
}

module attributes {stable_mosaic.version = 11 : i64} {
  func.func @mlp_kernel(%arg0: i32, %arg1: memref<8x16xf32, #tpu.memory_space<vmem>>, %arg2: memref<16x128xf32, #tpu.memory_space<vmem>>, %arg3: memref<128x128xf32, #tpu.memory_space<vmem>>, %arg4: memref<128x8xf32, #tpu.memory_space<vmem>>, %arg5: memref<3x128xf32, #tpu.memory_space<vmem>>, %arg6: memref<8x8xf32, #tpu.memory_space<vmem>>) attributes {dimension_semantics = [#tpu.dimension_semantics<parallel>], iteration_bounds = array<i64: 1>, scalar_prefetch = 0 : i64, scratch_operands = 0 : i64, tpu.core_type = #tpu.core_type<tc>, window_params = [{transform_indices = @transform_0, window_bounds = array<i64: 8, 16>}, {pipeline_mode = #tpu.pipeline_mode<synchronous>, transform_indices = @transform_1, window_bounds = array<i64: 16, 128>}, {pipeline_mode = #tpu.pipeline_mode<synchronous>, transform_indices = @transform_2, window_bounds = array<i64: 128, 128>}, {pipeline_mode = #tpu.pipeline_mode<synchronous>, transform_indices = @transform_3, window_bounds = array<i64: 128, 8>}, {pipeline_mode = #tpu.pipeline_mode<synchronous>, transform_indices = @transform_4, window_bounds = array<i64: 3, 128>}, {transform_indices = @transform_5, window_bounds = array<i64: 8, 8>}]} {
    %c0 = arith.constant 0 : index
    %c0_0 = arith.constant 0 : index
    %0 = vector.load %arg1[%c0, %c0_0] : memref<8x16xf32, #tpu.memory_space<vmem>>, vector<8x16xf32>
    %c0_1 = arith.constant 0 : index
    %c0_2 = arith.constant 0 : index
    %1 = vector.load %arg2[%c0_1, %c0_2] : memref<16x128xf32, #tpu.memory_space<vmem>>, vector<16x128xf32>
    %cst = arith.constant dense<0.000000e+00> : vector<8x128xf32>
    %2 = tpu.matmul %0, %1, %cst {dimension_numbers = #tpu.dot_dimension_numbers<[1], [0], [0], [1], [0, 0, 1, 1], [], []>} : vector<8x16xf32>, vector<16x128xf32>, vector<8x128xf32> -> vector<8x128xf32>
    %c0_3 = arith.constant 0 : index
    %c0_4 = arith.constant 0 : index
    %3 = vector.load %arg5[%c0_3, %c0_4] : memref<3x128xf32, #tpu.memory_space<vmem>>, vector<1x128xf32>
    %4 = vector.broadcast %3 : vector<1x128xf32> to vector<8x128xf32>
    %5 = arith.addf %2, %4 : vector<8x128xf32>
    %cst_5 = arith.constant 0.000000e+00 : f32
    %6 = vector.broadcast %cst_5 : f32 to vector<8x128xf32>
    %7 = arith.maximumf %5, %6 : vector<8x128xf32>
    %c0_6 = arith.constant 0 : index
    %c0_7 = arith.constant 0 : index
    %8 = vector.load %arg3[%c0_6, %c0_7] : memref<128x128xf32, #tpu.memory_space<vmem>>, vector<128x128xf32>
    %cst_8 = arith.constant dense<0.000000e+00> : vector<8x128xf32>
    %9 = tpu.matmul %7, %8, %cst_8 {dimension_numbers = #tpu.dot_dimension_numbers<[1], [0], [0], [1], [0, 0, 1, 1], [], []>} : vector<8x128xf32>, vector<128x128xf32>, vector<8x128xf32> -> vector<8x128xf32>
    %c1 = arith.constant 1 : index
    %c0_9 = arith.constant 0 : index
    %10 = vector.load %arg5[%c1, %c0_9] : memref<3x128xf32, #tpu.memory_space<vmem>>, vector<1x128xf32>
    %11 = vector.broadcast %10 : vector<1x128xf32> to vector<8x128xf32>
    %12 = arith.addf %9, %11 : vector<8x128xf32>
    %cst_10 = arith.constant 0.000000e+00 : f32
    %13 = vector.broadcast %cst_10 : f32 to vector<8x128xf32>
    %14 = arith.maximumf %12, %13 : vector<8x128xf32>
    %c0_11 = arith.constant 0 : index
    %c0_12 = arith.constant 0 : index
    %15 = vector.load %arg4[%c0_11, %c0_12] : memref<128x8xf32, #tpu.memory_space<vmem>>, vector<128x8xf32>
    %cst_13 = arith.constant dense<0.000000e+00> : vector<8x8xf32>
    %16 = tpu.matmul %14, %15, %cst_13 {dimension_numbers = #tpu.dot_dimension_numbers<[1], [0], [0], [1], [0, 0, 1, 1], [], []>} : vector<8x128xf32>, vector<128x8xf32>, vector<8x8xf32> -> vector<8x8xf32>
    %c2 = arith.constant 2 : index
    %c0_14 = arith.constant 0 : index
    %17 = vector.load %arg5[%c2, %c0_14] : memref<3x128xf32, #tpu.memory_space<vmem>>, vector<1x8xf32>
    %18 = vector.broadcast %17 : vector<1x8xf32> to vector<8x8xf32>
    %19 = arith.addf %16, %18 : vector<8x8xf32>
    %c0_15 = arith.constant 0 : index
    %c0_16 = arith.constant 0 : index
    %20 = vector.load %arg6[%c0_15, %c0_16] : memref<8x8xf32, #tpu.memory_space<vmem>>, vector<8x8xf32>
    tpu.vector_store %arg6[%c0_15, %c0_16], %19 {strides = array<i32>} : memref<8x8xf32, #tpu.memory_space<vmem>>, vector<8x8xf32>,
    return
  }
  func.func @transform_0(%arg0: i32) -> (i32, i32) {
    %c0_i32 = arith.constant 0 : i32
    %c0_i32_0 = arith.constant 0 : i32
    return %arg0, %c0_i32 : i32, i32
  }
  func.func @transform_1(%arg0: i32) -> (i32, i32) {
    %c0_i32 = arith.constant 0 : i32
    %c0_i32_0 = arith.constant 0 : i32
    %c0_i32_1 = arith.constant 0 : i32
    return %c0_i32, %c0_i32_0 : i32, i32
  }
  func.func @transform_2(%arg0: i32) -> (i32, i32) {
    %c0_i32 = arith.constant 0 : i32
    %c0_i32_0 = arith.constant 0 : i32
    %c0_i32_1 = arith.constant 0 : i32
    return %c0_i32, %c0_i32_0 : i32, i32
  }
  func.func @transform_3(%arg0: i32) -> (i32, i32) {
    %c0_i32 = arith.constant 0 : i32
    %c0_i32_0 = arith.constant 0 : i32
    %c0_i32_1 = arith.constant 0 : i32
    return %c0_i32, %c0_i32_0 : i32, i32
  }
  func.func @transform_4(%arg0: i32) -> (i32, i32) {
    %c0_i32 = arith.constant 0 : i32
    %c0_i32_0 = arith.constant 0 : i32
    %c0_i32_1 = arith.constant 0 : i32
    return %c0_i32, %c0_i32_0 : i32, i32
  }
  func.func @transform_5(%arg0: i32) -> (i32, i32) {
    %c0_i32 = arith.constant 0 : i32
    %c0_i32_0 = arith.constant 0 : i32
    return %arg0, %c0_i32 : i32, i32
  }
}

</mosaic_0001>

<llo_original>
// kernel: tpu_custom_call.1
$region0: #{tpu_custom_call.1}
  #allocation0 [shape = 'u32[]', space=smem, size = 0x4, offset = 0x4, fixed_abs, tag = 'smem constant byte address 0x4 - core index']
  #allocation1 [shape = 'u32[144,128]{1,0:T(1,128)}', space=vmem, size = 0x12000, scoped, tag = 'internal scratch']
  %s0 = inlined_call_operand.vmem [shape: f32[8,16], index: 0, kind: input, shape index: {}]
  %s1 = inlined_call_operand.hbm [shape: f32[16,128], index: 1, kind: input, shape index: {}]
  %s2 = inlined_call_operand.vmem [shape: f32[128,128], index: 2, kind: input, shape index: {}]
  %s3 = inlined_call_operand.vmem [shape: f32[128,8], index: 3, kind: input, shape index: {}]
  %s4 = inlined_call_operand.vmem [shape: f32[3,128], index: 4, kind: input, shape index: {}]
  %s5 = inlined_call_operand.hbm [shape: f32[8,8], index: 5, kind: output, shape index: {}]
  %s6 = sld [smem:[#allocation0]]
  $region34: #{tpu_custom_call.1} parent=0
    _
  %s8 = ssub.s32 1, %s6
  %s9 = scalar_select 0, %s8, %s6
  $region1: #{tpu_custom_call.1} parent=0
    #allocation2 [shape = 'u8[8192]{0}', space=vmem, size = 0x2000, scoped, tag = 'input window, operand 1, single buffered']
    #allocation3 [shape = 's32[1]{0}', space=sflag, size = 0x4, scoped, tag = 'scoped memory for tpu_custom_call.1']
    #allocation4 [shape = 's32[1]{0}', space=sflag, size = 0x4, scoped, tag = 'scoped memory for tpu_custom_call.1']
    #allocation5 [shape = 'u8[4096]{0}', space=vmem, size = 0x1000, scoped, tag = 'output window, operand 0, single buffered']
    %10 = vsyncpa [#allocation3], 0
    %11 = vsyncpa [#allocation4], 0
    // Predicated region
    $region2: #{tpu_custom_call.1} parent=1 // pred_check
      _
    $region3: #{tpu_custom_call.1} parent=1 // pred_check_branch
      %13 = sbr.rel (0) target = $region5
    $region4: #{tpu_custom_call.1} parent=1 // pred_region
      _
    $region5: #{tpu_custom_call.1} parent=1 // pred_fallthru
      _
    // Predicated region
    $region6: #{tpu_custom_call.1} parent=1 // pred_check
      _
    $region7: #{tpu_custom_call.1} parent=1 // pred_check_branch
      %15 = sbr.rel (0) target = $region9
    $region8: #{tpu_custom_call.1} parent=1 // pred_region
      %s17 = ssub.s32 256, 256
      %18 = vsyncadd [#allocation3], %s17
      %s19 = sshll.u32 [#allocation2], 4
      %s20 = int_to_ptr.vmem [resolvable:$true] %s19
      %25 = dma.hbm_to_vmem [thread:$0]  %s1, 256, %s20, [#allocation3], 128, 128, 8
    $region9: #{tpu_custom_call.1} parent=1 // pred_fallthru
      _
    // Predicated region
    $region10: #{tpu_custom_call.1} parent=1 // pred_check
      _
    $region11: #{tpu_custom_call.1} parent=1 // pred_check_branch
      %27 = sbr.rel (0) target = $region13
    $region12: #{tpu_custom_call.1} parent=1 // pred_region
      _
    $region13: #{tpu_custom_call.1} parent=1 // pred_fallthru
      _
    // Predicated region
    $region14: #{tpu_custom_call.1} parent=1 // pred_check
      _
    $region15: #{tpu_custom_call.1} parent=1 // pred_check_branch
      %29 = sbr.rel (0) target = $region17
    $region16: #{tpu_custom_call.1} parent=1 // pred_region
      _
    $region17: #{tpu_custom_call.1} parent=1 // pred_fallthru
      _
    // Predicated region
    $region18: #{tpu_custom_call.1} parent=1 // pred_check
      _
    $region19: #{tpu_custom_call.1} parent=1 // pred_check_branch
      %31 = sbr.rel (0) target = $region21
    $region20: #{tpu_custom_call.1} parent=1 // pred_region
      _
    $region21: #{tpu_custom_call.1} parent=1 // pred_fallthru
      _
    // Predicated region
    $region22: #{tpu_custom_call.1} parent=1 // pred_check
      _
    $region23: #{tpu_custom_call.1} parent=1 // pred_check_branch
      %33 = sbr.rel (0) target = $region25
    $region24: #{tpu_custom_call.1} parent=1 // pred_region
      %34 = dma.done [#allocation3], 256
    $region25: #{tpu_custom_call.1} parent=1 // pred_fallthru
      _
    %v35 = vld [vmem:[%s0] sm:$0xff]
    %v36 = vld [vmem:[#allocation2] sm:$0xff]
    %v37 = vld [vmem:[#allocation2 + $0x8] sm:$0xff]
    %v38 = vld [vmem:[%s4] sm:$0x1]
    %v39 = vlaneseq
    %v40 = vshrl.u32 %v39, 7
    %v41 = vsub.s32 0, %v40
    %v42 = vrot.slane %v38, %v41
    %vm43 = vcmask 130048
    %v45 = vsel %vm43, %v35, 0
    %47 = vmatprep.subr.mxu0 0.0
    %48 = vmatpush1.msra.mxu0 %v36
    %49 = vmatprep.subr.mxu0 0.0
    %50 = vmatpush1.msra.mxu0 %v37
    %51 = vmatprep.subr.mxu0 0.0
    %52 = vmatpush1.msra.mxu0 0.0
    %53 = vmatprep.subr.mxu0 0.0
    %54 = vmatpush1.msra.mxu0 0.0
    %55 = vmatprep.subr.mxu0 0.0
    %56 = vmatpush1.msra.mxu0 0.0
    %57 = vmatprep.subr.mxu0 0.0
    %58 = vmatpush1.msra.mxu0 0.0
    %59 = vmatprep.subr.mxu0 0.0
    %60 = vmatpush1.msra.mxu0 0.0
    %61 = vmatprep.subr.mxu0 0.0
    %62 = vmatpush1.msra.mxu0 0.0
    %63 = vmatprep.subr.mxu0 0.0
    %64 = vmatpush1.msra.mxu0 0.0
    %65 = vmatprep.subr.mxu0 0.0
    %66 = vmatpush1.msra.mxu0 0.0
    %67 = vmatprep.subr.mxu0 0.0
    %68 = vmatpush1.msra.mxu0 0.0
    %69 = vmatprep.subr.mxu0 0.0
    %70 = vmatpush1.msra.mxu0 0.0
    %71 = vmatprep.subr.mxu0 0.0
    %72 = vmatpush1.msra.mxu0 0.0
    %73 = vmatprep.subr.mxu0 0.0
    %74 = vmatpush1.msra.mxu0 0.0
    %75 = vmatprep.subr.mxu0 0.0
    %76 = vmatpush1.msra.mxu0 0.0
    %77 = vmatprep.subr.mxu0 0.0
    %78 = vmatpush1.msra.mxu0 0.0
    %79 = vmatprep.subr.mxu0 0.0
    %80 = vmatpush1.msra.mxu0 0.0
    %81 = vmatprep.subr.mxu0 0.0
    %82 = vmatpush1.msra.mxu0 0.0
    %83 = vmatprep.subr.mxu0 0.0
    %84 = vmatpush1.msra.mxu0 0.0
    %85 = vmatprep.subr.mxu0 0.0
    %86 = vmatpush1.msra.mxu0 0.0
    %87 = vmatprep.subr.mxu0 0.0
    %88 = vmatpush1.msra.mxu0 0.0
    %89 = vmatprep.subr.mxu0 0.0
    %90 = vmatpush1.msra.mxu0 0.0
    %91 = vmatprep.subr.mxu0 0.0
    %92 = vmatpush1.msra.mxu0 0.0
    %93 = vmatprep.subr.mxu0 0.0
    %94 = vmatpush1.msra.mxu0 0.0
    %95 = vmatprep.subr.mxu0 0.0
    %96 = vmatpush1.msra.mxu0 0.0
    %97 = vmatprep.subr.mxu0 0.0
    %98 = vmatpush1.msra.mxu0 0.0
    %99 = vmatprep.subr.mxu0 0.0
    %100 = vmatpush1.msra.mxu0 0.0
    %101 = vmatprep.subr.mxu0 0.0
    %102 = vmatpush1.msra.mxu0 0.0
    %103 = vmatprep.subr.mxu0 0.0
    %104 = vmatpush1.msra.mxu0 0.0
    %105 = vmatprep.subr.mxu0 0.0
    %106 = vmatpush1.msra.mxu0 0.0
    %107 = vmatprep.subr.mxu0 0.0
    %108 = vmatpush1.msra.mxu0 0.0
    %109 = vmatprep.subr.mxu0 0.0
    %110 = vmatpush1.msra.mxu0 0.0
    %111 = vmatprep.mubr.f32.mxu0 0.0
    %112 = vmatmul.mubr.f32.gmra.mrb[0].mxu0 %v45
    %v113 = vpop.f32.mrb[0].mxu0
    %v114 = vadd.f32 %v42, %v113
    %v115 = vpop.f32.mrb[0].mxu0
    %116 = vdwg.mxu0
    %v117 = vmax.f32 %v114, 0.0
    %v118 = vld [vmem:[%s2] sm:$0xff]
    %v119 = vld [vmem:[%s2 + $0x8] sm:$0xff]
    %v120 = vld [vmem:[%s2 + $0x10] sm:$0xff]
    %v121 = vld [vmem:[%s2 + $0x18] sm:$0xff]
    %v122 = vld [vmem:[%s2 + $0x20] sm:$0xff]
    %v123 = vld [vmem:[%s2 + $0x28] sm:$0xff]
    %v124 = vld [vmem:[%s2 + $0x30] sm:$0xff]
    %v125 = vld [vmem:[%s2 + $0x38] sm:$0xff]
    %v126 = vld [vmem:[%s2 + $0x40] sm:$0xff]
    %v127 = vld [vmem:[%s2 + $0x48] sm:$0xff]
    %v128 = vld [vmem:[%s2 + $0x50] sm:$0xff]
    %v129 = vld [vmem:[%s2 + $0x58] sm:$0xff]
    %v130 = vld [vmem:[%s2 + $0x60] sm:$0xff]
    %v131 = vld [vmem:[%s2 + $0x68] sm:$0xff]
    %v132 = vld [vmem:[%s2 + $0x70] sm:$0xff]
    %v133 = vld [vmem:[%s2 + $0x78] sm:$0xff]
    %v134 = vld [vmem:[%s4 + $0x1] sm:$0x1]
    %v135 = vlaneseq
    %v136 = vshrl.u32 %v135, 7
    %v137 = vsub.s32 0, %v136
    %v138 = vrot.slane %v134, %v137
    %139 = vmatprep.subr.mxu0 0.0
    %140 = vmatpush1.msra.mxu0 %v118
    %141 = vmatprep.subr.mxu0 0.0
    %142 = vmatpush1.msra.mxu0 %v119
    %143 = vmatprep.subr.mxu0 0.0
    %144 = vmatpush1.msra.mxu0 %v120
    %145 = vmatprep.subr.mxu0 0.0
    %146 = vmatpush1.msra.mxu0 %v121
    %147 = vmatprep.subr.mxu0 0.0
    %148 = vmatpush1.msra.mxu0 %v122
    %149 = vmatprep.subr.mxu0 0.0
    %150 = vmatpush1.msra.mxu0 %v123
    %151 = vmatprep.subr.mxu0 0.0
    %152 = vmatpush1.msra.mxu0 %v124
    %153 = vmatprep.subr.mxu0 0.0
    %154 = vmatpush1.msra.mxu0 %v125
    %155 = vmatprep.subr.mxu0 0.0
    %156 = vmatpush1.msra.mxu0 %v126
    %157 = vmatprep.subr.mxu0 0.0
    %158 = vmatpush1.msra.mxu0 %v127
    %159 = vmatprep.subr.mxu0 0.0
    %160 = vmatpush1.msra.mxu0 %v128
    %161 = vmatprep.subr.mxu0 0.0
    %162 = vmatpush1.msra.mxu0 %v129
    %163 = vmatprep.subr.mxu0 0.0
    %164 = vmatpush1.msra.mxu0 %v130
    %165 = vmatprep.subr.mxu0 0.0
    %166 = vmatpush1.msra.mxu0 %v131
    %167 = vmatprep.subr.mxu0 0.0
    %168 = vmatpush1.msra.mxu0 %v132
    %169 = vmatprep.subr.mxu0 0.0
    %170 = vmatpush1.msra.mxu0 %v133
    %171 = vmatprep.subr.mxu0 0.0
    %172 = vmatpush1.msra.mxu0 0.0
    %173 = vmatprep.subr.mxu0 0.0
    %174 = vmatpush1.msra.mxu0 0.0
    %175 = vmatprep.subr.mxu0 0.0
    %176 = vmatpush1.msra.mxu0 0.0
    %177 = vmatprep.subr.mxu0 0.0
    %178 = vmatpush1.msra.mxu0 0.0
    %179 = vmatprep.subr.mxu0 0.0
    %180 = vmatpush1.msra.mxu0 0.0
    %181 = vmatprep.subr.mxu0 0.0
    %182 = vmatpush1.msra.mxu0 0.0
    %183 = vmatprep.subr.mxu0 0.0
    %184 = vmatpush1.msra.mxu0 0.0
    %185 = vmatprep.subr.mxu0 0.0
    %186 = vmatpush1.msra.mxu0 0.0
    %187 = vmatprep.subr.mxu0 0.0
    %188 = vmatpush1.msra.mxu0 0.0
    %189 = vmatprep.subr.mxu0 0.0
    %190 = vmatpush1.msra.mxu0 0.0
    %191 = vmatprep.subr.mxu0 0.0
    %192 = vmatpush1.msra.mxu0 0.0
    %193 = vmatprep.subr.mxu0 0.0
    %194 = vmatpush1.msra.mxu0 0.0
    %195 = vmatprep.subr.mxu0 0.0
    %196 = vmatpush1.msra.mxu0 0.0
    %197 = vmatprep.subr.mxu0 0.0
    %198 = vmatpush1.msra.mxu0 0.0
    %199 = vmatprep.subr.mxu0 0.0
    %200 = vmatpush1.msra.mxu0 0.0
    %201 = vmatprep.subr.mxu0 0.0
    %202 = vmatpush1.msra.mxu0 0.0
    %203 = vmatprep.mubr.f32.mxu0 0.0
    %204 = vmatmul.mubr.f32.gmra.mrb[0].mxu0 %v117
    %v205 = vpop.f32.mrb[0].mxu0
    %v206 = vadd.f32 %v138, %v205
    %v207 = vpop.f32.mrb[0].mxu0
    %208 = vdwg.mxu0
    %v209 = vmax.f32 %v206, 0.0
    %v210 = vld [vmem:[%s3] sm:$0xff]
    %v211 = vld [vmem:[%s3 + $0x8] sm:$0xff]
    %v212 = vld [vmem:[%s3 + $0x10] sm:$0xff]
    %v213 = vld [vmem:[%s3 + $0x18] sm:$0xff]
    %v214 = vld [vmem:[%s3 + $0x20] sm:$0xff]
    %v215 = vld [vmem:[%s3 + $0x28] sm:$0xff]
    %v216 = vld [vmem:[%s3 + $0x30] sm:$0xff]
    %v217 = vld [vmem:[%s3 + $0x38] sm:$0xff]
    %v218 = vld [vmem:[%s3 + $0x40] sm:$0xff]
    %v219 = vld [vmem:[%s3 + $0x48] sm:$0xff]
    %v220 = vld [vmem:[%s3 + $0x50] sm:$0xff]
    %v221 = vld [vmem:[%s3 + $0x58] sm:$0xff]
    %v222 = vld [vmem:[%s3 + $0x60] sm:$0xff]
    %v223 = vld [vmem:[%s3 + $0x68] sm:$0xff]
    %v224 = vld [vmem:[%s3 + $0x70] sm:$0xff]
    %v225 = vld [vmem:[%s3 + $0x78] sm:$0xff]
    %v226 = vld [vmem:[%s4 + $0x2] sm:$0x1]
    %v227 = vlaneseq
    %v228 = vshrl.u32 %v227, 7
    %v229 = vsub.s32 0, %v228
    %v230 = vrot.slane %v226, %v229
    %231 = vmatprep.subr.mxu0 0.0
    %232 = vmatpush1.msra.mxu0 %v210
    %233 = vmatprep.subr.mxu0 0.0
    %234 = vmatpush1.msra.mxu0 %v211
    %235 = vmatprep.subr.mxu0 0.0
    %236 = vmatpush1.msra.mxu0 %v212
    %237 = vmatprep.subr.mxu0 0.0
    %238 = vmatpush1.msra.mxu0 %v213
    %239 = vmatprep.subr.mxu0 0.0
    %240 = vmatpush1.msra.mxu0 %v214
    %241 = vmatprep.subr.mxu0 0.0
    %242 = vmatpush1.msra.mxu0 %v215
    %243 = vmatprep.subr.mxu0 0.0
    %244 = vmatpush1.msra.mxu0 %v216
    %245 = vmatprep.subr.mxu0 0.0
    %246 = vmatpush1.msra.mxu0 %v217
    %247 = vmatprep.subr.mxu0 0.0
    %248 = vmatpush1.msra.mxu0 %v218
    %249 = vmatprep.subr.mxu0 0.0
    %250 = vmatpush1.msra.mxu0 %v219
    %251 = vmatprep.subr.mxu0 0.0
    %252 = vmatpush1.msra.mxu0 %v220
    %253 = vmatprep.subr.mxu0 0.0
    %254 = vmatpush1.msra.mxu0 %v221
    %255 = vmatprep.subr.mxu0 0.0
    %256 = vmatpush1.msra.mxu0 %v222
    %257 = vmatprep.subr.mxu0 0.0
    %258 = vmatpush1.msra.mxu0 %v223
    %259 = vmatprep.subr.mxu0 0.0
    %260 = vmatpush1.msra.mxu0 %v224
    %261 = vmatprep.subr.mxu0 0.0
    %262 = vmatpush1.msra.mxu0 %v225
    %263 = vmatprep.subr.mxu0 0.0
    %264 = vmatpush1.msra.mxu0 0.0
    %265 = vmatprep.subr.mxu0 0.0
    %266 = vmatpush1.msra.mxu0 0.0
    %267 = vmatprep.subr.mxu0 0.0
    %268 = vmatpush1.msra.mxu0 0.0
    %269 = vmatprep.subr.mxu0 0.0
    %270 = vmatpush1.msra.mxu0 0.0
    %271 = vmatprep.subr.mxu0 0.0
    %272 = vmatpush1.msra.mxu0 0.0
    %273 = vmatprep.subr.mxu0 0.0
    %274 = vmatpush1.msra.mxu0 0.0
    %275 = vmatprep.subr.mxu0 0.0
    %276 = vmatpush1.msra.mxu0 0.0
    %277 = vmatprep.subr.mxu0 0.0
    %278 = vmatpush1.msra.mxu0 0.0
    %279 = vmatprep.subr.mxu0 0.0
    %280 = vmatpush1.msra.mxu0 0.0
    %281 = vmatprep.subr.mxu0 0.0
    %282 = vmatpush1.msra.mxu0 0.0
    %283 = vmatprep.subr.mxu0 0.0
    %284 = vmatpush1.msra.mxu0 0.0
    %285 = vmatprep.subr.mxu0 0.0
    %286 = vmatpush1.msra.mxu0 0.0
    %287 = vmatprep.subr.mxu0 0.0
    %288 = vmatpush1.msra.mxu0 0.0
    %289 = vmatprep.subr.mxu0 0.0
    %290 = vmatpush1.msra.mxu0 0.0
    %291 = vmatprep.subr.mxu0 0.0
    %292 = vmatpush1.msra.mxu0 0.0
    %293 = vmatprep.subr.mxu0 0.0
    %294 = vmatpush1.msra.mxu0 0.0
    %295 = vmatprep.mubr.f32.mxu0 0.0
    %296 = vmatmul.mubr.f32.gmra.mrb[0].mxu0 %v209
    %v297 = vpop.f32.mrb[0].mxu0
    %v298 = vadd.f32 %v230, %v297
    %v299 = vpop.f32.mrb[0].mxu0
    %300 = vdwg.mxu0
    %vm301 = vcmask 64512
    %302 = vst.msk [vmem:[#allocation5] sm:$0xff] %vm301, %v298
    // Predicated region
    $region26: #{tpu_custom_call.1} parent=1 // pred_check
      _
    $region27: #{tpu_custom_call.1} parent=1 // pred_check_branch
      %304 = sbr.rel (0) target = $region29
    $region28: #{tpu_custom_call.1} parent=1 // pred_region
      %s306 = ssub.s32 128, 128
      %307 = vsyncadd [#allocation4], %s306
      %s309 = sshll.u32 [#allocation5], 4
      %s310 = int_to_ptr.vmem [resolvable:$true] %s309
      %312 = dma.vmem_to_hbm [thread:$0]  %s310, 128, %s5, [#allocation4]
    $region29: #{tpu_custom_call.1} parent=1 // pred_fallthru
      _
    // Predicated region
    $region30: #{tpu_custom_call.1} parent=1 // pred_check
      _
    $region31: #{tpu_custom_call.1} parent=1 // pred_check_branch
      %314 = sbr.rel (0) target = $region33
    $region32: #{tpu_custom_call.1} parent=1 // pred_region
      %315 = dma.done [#allocation4], 128
    $region33: #{tpu_custom_call.1} parent=1 // pred_fallthru
      _
    %316 = vsyncpa [#allocation3], 1
    %317 = vsyncpa [#allocation4], 1

// kernel: tpu_custom_call.1
$region0: #{tpu_custom_call.1}
  #allocation0 [shape = 'u32[]', space=smem, size = 0x4, offset = 0x4, fixed_abs, tag = 'smem constant byte address 0x4 - core index']
  #allocation1 [shape = 'u32[144,128]{1,0:T(1,128)}', space=vmem, size = 0x12000, scoped, tag = 'internal scratch']
  %s0 = inlined_call_operand.vmem [shape: f32[8,16], index: 0, kind: input, shape index: {}]
  %s1 = inlined_call_operand.hbm [shape: f32[16,128], index: 1, kind: input, shape index: {}]
  %s2 = inlined_call_operand.vmem [shape: f32[128,128], index: 2, kind: input, shape index: {}]
  %s3 = inlined_call_operand.vmem [shape: f32[128,8], index: 3, kind: input, shape index: {}]
  %s4 = inlined_call_operand.vmem [shape: f32[3,128], index: 4, kind: input, shape index: {}]
  %s5 = inlined_call_operand.hbm [shape: f32[8,8], index: 5, kind: output, shape index: {}]
  %s6 = sld [smem:[#allocation0]]
  $region34: #{tpu_custom_call.1} parent=0
    _
  %s8 = ssub.s32 1, %s6
  %s9 = scalar_select 0, %s8, %s6
  $region1: #{tpu_custom_call.1} parent=0
    #allocation2 [shape = 'u8[8192]{0}', space=vmem, size = 0x2000, scoped, tag = 'input window, operand 1, single buffered']
    #allocation3 [shape = 's32[1]{0}', space=sflag, size = 0x4, scoped, tag = 'scoped memory for tpu_custom_call.1']
    #allocation4 [shape = 's32[1]{0}', space=sflag, size = 0x4, scoped, tag = 'scoped memory for tpu_custom_call.1']
    #allocation5 [shape = 'u8[4096]{0}', space=vmem, size = 0x1000, scoped, tag = 'output window, operand 0, single buffered']
    %10 = vsyncpa [#allocation3], 0
    %11 = vsyncpa [#allocation4], 0
    // Predicated region
    $region2: #{tpu_custom_call.1} parent=1 // pred_check
      _
    $region3: #{tpu_custom_call.1} parent=1 // pred_check_branch
      %13 = sbr.rel (0) target = $region5
    $region4: #{tpu_custom_call.1} parent=1 // pred_region
      _
    $region5: #{tpu_custom_call.1} parent=1 // pred_fallthru
      _
    // Predicated region
    $region6: #{tpu_custom_call.1} parent=1 // pred_check
      _
    $region7: #{tpu_custom_call.1} parent=1 // pred_check_branch
      %15 = sbr.rel (0) target = $region9
    $region8: #{tpu_custom_call.1} parent=1 // pred_region
      %s17 = ssub.s32 256, 256
      %18 = vsyncadd [#allocation3], %s17
      %s19 = sshll.u32 [#allocation2], 4
      %s20 = int_to_ptr.vmem [resolvable:$true] %s19
      %25 = dma.hbm_to_vmem [thread:$0]  %s1, 256, %s20, [#allocation3], 128, 128, 8
    $region9: #{tpu_custom_call.1} parent=1 // pred_fallthru
      _
    // Predicated region
    $region10: #{tpu_custom_call.1} parent=1 // pred_check
      _
    $region11: #{tpu_custom_call.1} parent=1 // pred_check_branch
      %27 = sbr.rel (0) target = $region13
    $region12: #{tpu_custom_call.1} parent=1 // pred_region
      _
    $region13: #{tpu_custom_call.1} parent=1 // pred_fallthru
      _
    // Predicated region
    $region14: #{tpu_custom_call.1} parent=1 // pred_check
      _
    $region15: #{tpu_custom_call.1} parent=1 // pred_check_branch
      %29 = sbr.rel (0) target = $region17
    $region16: #{tpu_custom_call.1} parent=1 // pred_region
      _
    $region17: #{tpu_custom_call.1} parent=1 // pred_fallthru
      _
    // Predicated region
    $region18: #{tpu_custom_call.1} parent=1 // pred_check
      _
    $region19: #{tpu_custom_call.1} parent=1 // pred_check_branch
      %31 = sbr.rel (0) target = $region21
    $region20: #{tpu_custom_call.1} parent=1 // pred_region
      _
    $region21: #{tpu_custom_call.1} parent=1 // pred_fallthru
      _
    // Predicated region
    $region22: #{tpu_custom_call.1} parent=1 // pred_check
      _
    $region23: #{tpu_custom_call.1} parent=1 // pred_check_branch
      %33 = sbr.rel (0) target = $region25
    $region24: #{tpu_custom_call.1} parent=1 // pred_region
      %34 = dma.done [#allocation3], 256
    $region25: #{tpu_custom_call.1} parent=1 // pred_fallthru
      _
    %v35 = vld [vmem:[%s0] sm:$0xff]
    %v36 = vld [vmem:[#allocation2] sm:$0xff]
    %v37 = vld [vmem:[#allocation2 + $0x8] sm:$0xff]
    %v38 = vld [vmem:[%s4] sm:$0x1]
    %v39 = vlaneseq
    %v40 = vshrl.u32 %v39, 7
    %v41 = vsub.s32 0, %v40
    %v42 = vrot.slane %v38, %v41
    %vm43 = vcmask 130048
    %v45 = vsel %vm43, %v35, 0
    %47 = vmatprep.subr.mxu0 0.0
    %48 = vmatpush1.msra.mxu0 %v36
    %49 = vmatprep.subr.mxu0 0.0
    %50 = vmatpush1.msra.mxu0 %v37
    %51 = vmatprep.subr.mxu0 0.0
    %52 = vmatpush1.msra.mxu0 0.0
    %53 = vmatprep.subr.mxu0 0.0
    %54 = vmatpush1.msra.mxu0 0.0
    %55 = vmatprep.subr.mxu0 0.0
    %56 = vmatpush1.msra.mxu0 0.0
    %57 = vmatprep.subr.mxu0 0.0
    %58 = vmatpush1.msra.mxu0 0.0
    %59 = vmatprep.subr.mxu0 0.0
    %60 = vmatpush1.msra.mxu0 0.0
    %61 = vmatprep.subr.mxu0 0.0
    %62 = vmatpush1.msra.mxu0 0.0
    %63 = vmatprep.subr.mxu0 0.0
    %64 = vmatpush1.msra.mxu0 0.0
    %65 = vmatprep.subr.mxu0 0.0
    %66 = vmatpush1.msra.mxu0 0.0
    %67 = vmatprep.subr.mxu0 0.0
    %68 = vmatpush1.msra.mxu0 0.0
    %69 = vmatprep.subr.mxu0 0.0
    %70 = vmatpush1.msra.mxu0 0.0
    %71 = vmatprep.subr.mxu0 0.0
    %72 = vmatpush1.msra.mxu0 0.0
    %73 = vmatprep.subr.mxu0 0.0
    %74 = vmatpush1.msra.mxu0 0.0
    %75 = vmatprep.subr.mxu0 0.0
    %76 = vmatpush1.msra.mxu0 0.0
    %77 = vmatprep.subr.mxu0 0.0
    %78 = vmatpush1.msra.mxu0 0.0
    %79 = vmatprep.subr.mxu0 0.0
    %80 = vmatpush1.msra.mxu0 0.0
    %81 = vmatprep.subr.mxu0 0.0
    %82 = vmatpush1.msra.mxu0 0.0
    %83 = vmatprep.subr.mxu0 0.0
    %84 = vmatpush1.msra.mxu0 0.0
    %85 = vmatprep.subr.mxu0 0.0
    %86 = vmatpush1.msra.mxu0 0.0
    %87 = vmatprep.subr.mxu0 0.0
    %88 = vmatpush1.msra.mxu0 0.0
    %89 = vmatprep.subr.mxu0 0.0
    %90 = vmatpush1.msra.mxu0 0.0
    %91 = vmatprep.subr.mxu0 0.0
    %92 = vmatpush1.msra.mxu0 0.0
    %93 = vmatprep.subr.mxu0 0.0
    %94 = vmatpush1.msra.mxu0 0.0
    %95 = vmatprep.subr.mxu0 0.0
    %96 = vmatpush1.msra.mxu0 0.0
    %97 = vmatprep.subr.mxu0 0.0
    %98 = vmatpush1.msra.mxu0 0.0
    %99 = vmatprep.subr.mxu0 0.0
    %100 = vmatpush1.msra.mxu0 0.0
    %101 = vmatprep.subr.mxu0 0.0
    %102 = vmatpush1.msra.mxu0 0.0
    %103 = vmatprep.subr.mxu0 0.0
    %104 = vmatpush1.msra.mxu0 0.0
    %105 = vmatprep.subr.mxu0 0.0
    %106 = vmatpush1.msra.mxu0 0.0
    %107 = vmatprep.subr.mxu0 0.0
    %108 = vmatpush1.msra.mxu0 0.0
    %109 = vmatprep.subr.mxu0 0.0
    %110 = vmatpush1.msra.mxu0 0.0
    %111 = vmatprep.mubr.f32.mxu0 0.0
    %112 = vmatmul.mubr.f32.gmra.mrb[0].mxu0 %v45
    %v113 = vpop.f32.mrb[0].mxu0
    %v114 = vadd.f32 %v42, %v113
    %v115 = vpop.f32.mrb[0].mxu0
    %116 = vdwg.mxu0
    %v117 = vmax.f32 %v114, 0.0
    %v118 = vld [vmem:[%s2] sm:$0xff]
    %v119 = vld [vmem:[%s2 + $0x8] sm:$0xff]
    %v120 = vld [vmem:[%s2 + $0x10] sm:$0xff]
    %v121 = vld [vmem:[%s2 + $0x18] sm:$0xff]
    %v122 = vld [vmem:[%s2 + $0x20] sm:$0xff]
    %v123 = vld [vmem:[%s2 + $0x28] sm:$0xff]
    %v124 = vld [vmem:[%s2 + $0x30] sm:$0xff]
    %v125 = vld [vmem:[%s2 + $0x38] sm:$0xff]
    %v126 = vld [vmem:[%s2 + $0x40] sm:$0xff]
    %v127 = vld [vmem:[%s2 + $0x48] sm:$0xff]
    %v128 = vld [vmem:[%s2 + $0x50] sm:$0xff]
    %v129 = vld [vmem:[%s2 + $0x58] sm:$0xff]
    %v130 = vld [vmem:[%s2 + $0x60] sm:$0xff]
    %v131 = vld [vmem:[%s2 + $0x68] sm:$0xff]
    %v132 = vld [vmem:[%s2 + $0x70] sm:$0xff]
    %v133 = vld [vmem:[%s2 + $0x78] sm:$0xff]
    %v134 = vld [vmem:[%s4 + $0x1] sm:$0x1]
    %v135 = vlaneseq
    %v136 = vshrl.u32 %v135, 7
    %v137 = vsub.s32 0, %v136
    %v138 = vrot.slane %v134, %v137
    %139 = vmatprep.subr.mxu0 0.0
    %140 = vmatpush1.msra.mxu0 %v118
    %141 = vmatprep.subr.mxu0 0.0
    %142 = vmatpush1.msra.mxu0 %v119
    %143 = vmatprep.subr.mxu0 0.0
    %144 = vmatpush1.msra.mxu0 %v120
    %145 = vmatprep.subr.mxu0 0.0
    %146 = vmatpush1.msra.mxu0 %v121
    %147 = vmatprep.subr.mxu0 0.0
    %148 = vmatpush1.msra.mxu0 %v122
    %149 = vmatprep.subr.mxu0 0.0
    %150 = vmatpush1.msra.mxu0 %v123
    %151 = vmatprep.subr.mxu0 0.0
    %152 = vmatpush1.msra.mxu0 %v124
    %153 = vmatprep.subr.mxu0 0.0
    %154 = vmatpush1.msra.mxu0 %v125
    %155 = vmatprep.subr.mxu0 0.0
    %156 = vmatpush1.msra.mxu0 %v126
    %157 = vmatprep.subr.mxu0 0.0
    %158 = vmatpush1.msra.mxu0 %v127
    %159 = vmatprep.subr.mxu0 0.0
    %160 = vmatpush1.msra.mxu0 %v128
    %161 = vmatprep.subr.mxu0 0.0
    %162 = vmatpush1.msra.mxu0 %v129
    %163 = vmatprep.subr.mxu0 0.0
    %164 = vmatpush1.msra.mxu0 %v130
    %165 = vmatprep.subr.mxu0 0.0
    %166 = vmatpush1.msra.mxu0 %v131
    %167 = vmatprep.subr.mxu0 0.0
    %168 = vmatpush1.msra.mxu0 %v132
    %169 = vmatprep.subr.mxu0 0.0
    %170 = vmatpush1.msra.mxu0 %v133
    %171 = vmatprep.subr.mxu0 0.0
    %172 = vmatpush1.msra.mxu0 0.0
    %173 = vmatprep.subr.mxu0 0.0
    %174 = vmatpush1.msra.mxu0 0.0
    %175 = vmatprep.subr.mxu0 0.0
    %176 = vmatpush1.msra.mxu0 0.0
    %177 = vmatprep.subr.mxu0 0.0
    %178 = vmatpush1.msra.mxu0 0.0
    %179 = vmatprep.subr.mxu0 0.0
    %180 = vmatpush1.msra.mxu0 0.0
    %181 = vmatprep.subr.mxu0 0.0
    %182 = vmatpush1.msra.mxu0 0.0
    %183 = vmatprep.subr.mxu0 0.0
    %184 = vmatpush1.msra.mxu0 0.0
    %185 = vmatprep.subr.mxu0 0.0
    %186 = vmatpush1.msra.mxu0 0.0
    %187 = vmatprep.subr.mxu0 0.0
    %188 = vmatpush1.msra.mxu0 0.0
    %189 = vmatprep.subr.mxu0 0.0
    %190 = vmatpush1.msra.mxu0 0.0
    %191 = vmatprep.subr.mxu0 0.0
    %192 = vmatpush1.msra.mxu0 0.0
    %193 = vmatprep.subr.mxu0 0.0
    %194 = vmatpush1.msra.mxu0 0.0
    %195 = vmatprep.subr.mxu0 0.0
    %196 = vmatpush1.msra.mxu0 0.0
    %197 = vmatprep.subr.mxu0 0.0
    %198 = vmatpush1.msra.mxu0 0.0
    %199 = vmatprep.subr.mxu0 0.0
    %200 = vmatpush1.msra.mxu0 0.0
    %201 = vmatprep.subr.mxu0 0.0
    %202 = vmatpush1.msra.mxu0 0.0
    %203 = vmatprep.mubr.f32.mxu0 0.0
    %204 = vmatmul.mubr.f32.gmra.mrb[0].mxu0 %v117
    %v205 = vpop.f32.mrb[0].mxu0
    %v206 = vadd.f32 %v138, %v205
    %v207 = vpop.f32.mrb[0].mxu0
    %208 = vdwg.mxu0
    %v209 = vmax.f32 %v206, 0.0
    %v210 = vld [vmem:[%s3] sm:$0xff]
    %v211 = vld [vmem:[%s3 + $0x8] sm:$0xff]
    %v212 = vld [vmem:[%s3 + $0x10] sm:$0xff]
    %v213 = vld [vmem:[%s3 + $0x18] sm:$0xff]
    %v214 = vld [vmem:[%s3 + $0x20] sm:$0xff]
    %v215 = vld [vmem:[%s3 + $0x28] sm:$0xff]
    %v216 = vld [vmem:[%s3 + $0x30] sm:$0xff]
    %v217 = vld [vmem:[%s3 + $0x38] sm:$0xff]
    %v218 = vld [vmem:[%s3 + $0x40] sm:$0xff]
    %v219 = vld [vmem:[%s3 + $0x48] sm:$0xff]
    %v220 = vld [vmem:[%s3 + $0x50] sm:$0xff]
    %v221 = vld [vmem:[%s3 + $0x58] sm:$0xff]
    %v222 = vld [vmem:[%s3 + $0x60] sm:$0xff]
    %v223 = vld [vmem:[%s3 + $0x68] sm:$0xff]
    %v224 = vld [vmem:[%s3 + $0x70] sm:$0xff]
    %v225 = vld [vmem:[%s3 + $0x78] sm:$0xff]
    %v226 = vld [vmem:[%s4 + $0x2] sm:$0x1]
    %v227 = vlaneseq
    %v228 = vshrl.u32 %v227, 7
    %v229 = vsub.s32 0, %v228
    %v230 = vrot.slane %v226, %v229
    %231 = vmatprep.subr.mxu0 0.0
    %232 = vmatpush1.msra.mxu0 %v210
    %233 = vmatprep.subr.mxu0 0.0
    %234 = vmatpush1.msra.mxu0 %v211
    %235 = vmatprep.subr.mxu0 0.0
    %236 = vmatpush1.msra.mxu0 %v212
    %237 = vmatprep.subr.mxu0 0.0
    %238 = vmatpush1.msra.mxu0 %v213
    %239 = vmatprep.subr.mxu0 0.0
    %240 = vmatpush1.msra.mxu0 %v214
    %241 = vmatprep.subr.mxu0 0.0
    %242 = vmatpush1.msra.mxu0 %v215
    %243 = vmatprep.subr.mxu0 0.0
    %244 = vmatpush1.msra.mxu0 %v216
    %245 = vmatprep.subr.mxu0 0.0
    %246 = vmatpush1.msra.mxu0 %v217
    %247 = vmatprep.subr.mxu0 0.0
    %248 = vmatpush1.msra.mxu0 %v218
    %249 = vmatprep.subr.mxu0 0.0
    %250 = vmatpush1.msra.mxu0 %v219
    %251 = vmatprep.subr.mxu0 0.0
    %252 = vmatpush1.msra.mxu0 %v220
    %253 = vmatprep.subr.mxu0 0.0
    %254 = vmatpush1.msra.mxu0 %v221
    %255 = vmatprep.subr.mxu0 0.0
    %256 = vmatpush1.msra.mxu0 %v222
    %257 = vmatprep.subr.mxu0 0.0
    %258 = vmatpush1.msra.mxu0 %v223
    %259 = vmatprep.subr.mxu0 0.0
    %260 = vmatpush1.msra.mxu0 %v224
    %261 = vmatprep.subr.mxu0 0.0
    %262 = vmatpush1.msra.mxu0 %v225
    %263 = vmatprep.subr.mxu0 0.0
    %264 = vmatpush1.msra.mxu0 0.0
    %265 = vmatprep.subr.mxu0 0.0
    %266 = vmatpush1.msra.mxu0 0.0
    %267 = vmatprep.subr.mxu0 0.0
    %268 = vmatpush1.msra.mxu0 0.0
    %269 = vmatprep.subr.mxu0 0.0
    %270 = vmatpush1.msra.mxu0 0.0
    %271 = vmatprep.subr.mxu0 0.0
    %272 = vmatpush1.msra.mxu0 0.0
    %273 = vmatprep.subr.mxu0 0.0
    %274 = vmatpush1.msra.mxu0 0.0
    %275 = vmatprep.subr.mxu0 0.0
    %276 = vmatpush1.msra.mxu0 0.0
    %277 = vmatprep.subr.mxu0 0.0
    %278 = vmatpush1.msra.mxu0 0.0
    %279 = vmatprep.subr.mxu0 0.0
    %280 = vmatpush1.msra.mxu0 0.0
    %281 = vmatprep.subr.mxu0 0.0
    %282 = vmatpush1.msra.mxu0 0.0
    %283 = vmatprep.subr.mxu0 0.0
    %284 = vmatpush1.msra.mxu0 0.0
    %285 = vmatprep.subr.mxu0 0.0
    %286 = vmatpush1.msra.mxu0 0.0
    %287 = vmatprep.subr.mxu0 0.0
    %288 = vmatpush1.msra.mxu0 0.0
    %289 = vmatprep.subr.mxu0 0.0
    %290 = vmatpush1.msra.mxu0 0.0
    %291 = vmatprep.subr.mxu0 0.0
    %292 = vmatpush1.msra.mxu0 0.0
    %293 = vmatprep.subr.mxu0 0.0
    %294 = vmatpush1.msra.mxu0 0.0
    %295 = vmatprep.mubr.f32.mxu0 0.0
    %296 = vmatmul.mubr.f32.gmra.mrb[0].mxu0 %v209
    %v297 = vpop.f32.mrb[0].mxu0
    %v298 = vadd.f32 %v230, %v297
    %v299 = vpop.f32.mrb[0].mxu0
    %300 = vdwg.mxu0
    %vm301 = vcmask 64512
    %302 = vst.msk [vmem:[#allocation5] sm:$0xff] %vm301, %v298
    // Predicated region
    $region26: #{tpu_custom_call.1} parent=1 // pred_check
      _
    $region27: #{tpu_custom_call.1} parent=1 // pred_check_branch
      %304 = sbr.rel (0) target = $region29
    $region28: #{tpu_custom_call.1} parent=1 // pred_region
      %s306 = ssub.s32 128, 128
      %307 = vsyncadd [#allocation4], %s306
      %s309 = sshll.u32 [#allocation5], 4
      %s310 = int_to_ptr.vmem [resolvable:$true] %s309
      %312 = dma.vmem_to_hbm [thread:$0]  %s310, 128, %s5, [#allocation4]
    $region29: #{tpu_custom_call.1} parent=1 // pred_fallthru
      _
    // Predicated region
    $region30: #{tpu_custom_call.1} parent=1 // pred_check
      _
    $region31: #{tpu_custom_call.1} parent=1 // pred_check_branch
      %314 = sbr.rel (0) target = $region33
    $region32: #{tpu_custom_call.1} parent=1 // pred_region
      %315 = dma.done [#allocation4], 128
    $region33: #{tpu_custom_call.1} parent=1 // pred_fallthru
      _
    %316 = vsyncpa [#allocation3], 1
    %317 = vsyncpa [#allocation4], 1

</llo_original>
